<compile_context>
chip_gen: v5e
topology: v5e:2x2
jax: 0.10.0
libtpu: 0.0.40
codegen_flags: <defaults>
</compile_context>

<pallas_src>
import math

import jax
import jax.numpy as jnp
from jax.experimental import pallas as pl
from jax.experimental.pallas import tpu as pltpu

# ---- "opt" configuration (small synthetic sizes) ----------------------------
RATIOS = (0.5, 1.0, 2.0)
SCALES = (8.0, 16.0, 32.0)
FEATURE_STRIDE = 16
IN_CHANNEL = 4
MID_CHANNEL = 32
N_ANCHOR = len(RATIOS) * len(SCALES)  # 9
NOUT = 128                            # lane-dense packed output width


# ---------------------------- anchor utilities (glue) ------------------------
def get_base_anchor(ratios, scales, base_size):
    py = px = base_size / 2.0
    rows = []
    for r in ratios:
        for s in scales:
            h = base_size * s * math.sqrt(r)
            w = base_size * s * math.sqrt(1.0 / r)
            rows.append([py - h / 2.0, px - w / 2.0, py + h / 2.0, px + w / 2.0])
    return jnp.asarray(rows, dtype=jnp.float32)  # (A, 4) in (y1, x1, y2, x2)


def get_all_anchor(base_anchor, H, W, stride):
    shift_y = jnp.arange(H, dtype=jnp.float32) * stride
    shift_x = jnp.arange(W, dtype=jnp.float32) * stride
    sy, sx = jnp.meshgrid(shift_y, shift_x, indexing="ij")
    shift = jnp.stack([sy.ravel(), sx.ravel(), sy.ravel(), sx.ravel()], axis=1)
    allan = shift[:, None, :] + base_anchor[None, :, :]  # (H*W, A, 4)
    return allan.reshape(-1, 4)


def loc2bbox(anchor, loc):
    ah = anchor[:, 2] - anchor[:, 0]
    aw = anchor[:, 3] - anchor[:, 1]
    acy = anchor[:, 0] + 0.5 * ah
    acx = anchor[:, 1] + 0.5 * aw
    dy, dx, dh, dw = loc[:, 0], loc[:, 1], loc[:, 2], loc[:, 3]
    cy = dy * ah + acy
    cx = dx * aw + acx
    h = jnp.exp(dh) * ah
    w = jnp.exp(dw) * aw
    return jnp.stack([cy - 0.5 * h, cx - 0.5 * w, cy + 0.5 * h, cx + 0.5 * w], axis=1)


def simple_proposal(anchor, loc, fg_score, img_size, n_post=128, min_size=16.0):
    """fg_score is the (fg - bg) logit; sigmoid/softmax are monotonic, so the
    top-k ranking is identical to ranking on softmax(score)[:, 1]."""
    roi = loc2bbox(anchor, loc)
    roi = jnp.stack(
        [
            jnp.clip(roi[:, 0], 0.0, img_size[0]),
            jnp.clip(roi[:, 1], 0.0, img_size[1]),
            jnp.clip(roi[:, 2], 0.0, img_size[0]),
            jnp.clip(roi[:, 3], 0.0, img_size[1]),
        ],
        axis=1,
    )
    hs = roi[:, 2] - roi[:, 0]
    ws = roi[:, 3] - roi[:, 1]
    keep = (hs >= min_size) & (ws >= min_size)
    scores = jnp.where(keep, fg_score, -jnp.inf)
    # TODO(synk): ProposalCreator's NMS has no clean Pallas equivalent; roi is
    # top-k by fg logit (post-decode / clip / min-size filter).
    _, idx = jax.lax.top_k(scores, n_post)
    return roi[idx]


# ------------------------------ Pallas kernel --------------------------------
def _rpn_fused_kernel(patches_ref, w_ref, out_ref):
    # Single MXU pass: (tm, K) x (K, 128) -> (tm, 128), f32 accumulate.
    # conv1 + both 1x1 heads + bias are all folded into w_ref host-side
    # (bias rides a ones column in the patches), so the body is a pure
    # dot + lane-dense unmasked store -- no VALU/EUP epilogue.
    out_ref[...] = jnp.dot(
        patches_ref[...], w_ref[...], preferred_element_type=jnp.float32
    )


def _is_multi_tc_chip():
    """True for chips with >1 TensorCore per chip (v7x); v5e/v6e have 1 TC."""
    try:
        kind = jax.devices()[0].device_kind.lower()
    except Exception:
        return False
    return any(tag in kind for tag in ("v7", "7x"))


def rpn_heads_pallas(patches_bf16, w_fused, tm=None):
    HW, K1 = patches_bf16.shape
    assert w_fused.shape[0] == K1
    nout = w_fused.shape[1]

    if tm is None:
        # Biggest row tile that fits comfortably; per-step overhead ~0.35 us,
        # tiles >= 512 reach ~85% of HBM roofline at production sizes.
        tm = min(HW, 512)
        if _is_multi_tc_chip() and HW >= 16:
            # v7x: 2 TensorCores/chip -> give the "parallel" row axis >= 2
            # blocks so both cores are used.
            half = ((pl.cdiv(HW, 2) + 7) // 8) * 8
            tm = min(tm, max(8, half))

    grid = (pl.cdiv(HW, tm),)

    # TODO(synk): at production RPN sizes (Cin=512..1024, Cmid=512) move im2col
    # in-kernel (feature map left in HBM via memory_space=pl.ANY, per-row-tile
    # halo DMA, 9 shifted accumulating matmuls), add a K-axis "arbitrary" grid
    # dim with a (tm, 128) f32 VMEM accumulator sized against the chip's VMEM
    # (64 MiB on v7x), set vmem_limit_bytes explicitly, and single-buffer the
    # grid-invariant weight (pipeline_mode=pl.Buffered(1)).  At these toy sizes
    # the full-K single matmul with the default pipeline is optimal.
    return pl.pallas_call(
        _rpn_fused_kernel,
        out_shape=jax.ShapeDtypeStruct((HW, nout), jnp.float32),
        grid=grid,
        in_specs=[
            pl.BlockSpec((tm, K1), lambda i: (i, 0)),     # pixel-row tile
            pl.BlockSpec((K1, nout), lambda i: (0, 0)),   # fused weight (resident)
        ],
        out_specs=pl.BlockSpec((tm, nout), lambda i: (i, 0)),
        compiler_params=pltpu.CompilerParams(dimension_semantics=("parallel",)),
    )(patches_bf16, w_fused)


# ------------------------------ wrapper / glue --------------------------------
def im2col_3x3(x_hwc):
    H, W, C = x_hwc.shape
    xp = jnp.pad(x_hwc, ((1, 1), (1, 1), (0, 0)))
    cols = [xp[dy:dy + H, dx:dx + W, :] for dy in range(3) for dx in range(3)]
    patches = jnp.stack(cols, axis=2)  # (H, W, 9, C)
    return patches.reshape(H * W, 9 * C)


def init_rpn_params(key, cin, cmid, n_anchor):
    # at.init_weight(..., mean=0, std=0.01): normal weights, zero biases.
    k1, k2, k3 = jax.random.split(key, 3)
    w1 = jax.random.normal(k1, (3, 3, cin, cmid), jnp.float32) * 0.01
    w1 = w1.reshape(9 * cin, cmid)                 # matches im2col column order
    b1 = jnp.zeros((cmid,), jnp.float32)
    wloc = jax.random.normal(k2, (cmid, n_anchor * 4), jnp.float32) * 0.01
    bloc = jnp.zeros((n_anchor * 4,), jnp.float32)
    wsc = jax.random.normal(k3, (cmid, n_anchor * 2), jnp.float32) * 0.01
    bsc = jnp.zeros((n_anchor * 2,), jnp.float32)
    return (w1, b1, wloc, bloc, wsc, bsc)


def fold_rpn_params(w1, b1, wloc, bloc, wsc, bsc, nout=NOUT):
    """Fold conv1 + both 1x1 heads + the fg softmax-diff + all biases into one
    augmented weight.

    Exact because the reference module has NO activation between conv1 and the
    heads.  Column layout: [loc(4A) | score(2A) | fg_diff(A) | zero pad].
    Row layout: [9*Cin conv taps | bias row | zero pad to a sublane multiple];
    the wrapper appends a matching ones column (+ zero pad) to the patches.
    """
    wdiff = wsc[:, 1::2] - wsc[:, 0::2]                       # (Cmid, A) fg - bg
    bdiff = bsc[1::2] - bsc[0::2]                             # (A,)
    w_heads = jnp.concatenate([wloc, wsc, wdiff], axis=1)     # (Cmid, 7A)
    b_heads = jnp.concatenate([bloc, bsc, bdiff], axis=0)     # (7A,)
    w_fused = w1 @ w_heads                                    # (9*Cin, 7A)
    b_fused = b1 @ w_heads + b_heads                          # (7A,)
    w_aug = jnp.concatenate([w_fused, b_fused[None, :]], axis=0)  # (9*Cin+1, 7A)

    pad_n = nout - w_aug.shape[1]
    assert pad_n >= 0
    pad_k = (-w_aug.shape[0]) % 8        # pad K to a sublane multiple (inert zeros)
    w_aug = jnp.pad(w_aug, ((0, pad_k), (0, pad_n)))
    # bf16 weight (2x MXU throughput, half the DMA bytes); accumulate in f32.
    return w_aug.astype(jnp.bfloat16)


def rpn_forward(x, img_size, w_fused):
    n, c, H, W = x.shape
    base = get_base_anchor(RATIOS, SCALES, FEATURE_STRIDE)
    anchor = get_all_anchor(base, H, W, FEATURE_STRIDE)
    A = base.shape[0]

    # The torch module only uses batch element 0 downstream (`...[0]`); conv is
    # per-sample independent, so we run the kernel on element 0 only.
    x0 = jnp.transpose(x[0], (1, 2, 0))             # CHW -> HWC
    patches = im2col_3x3(x0)                        # (H*W, 9*Cin) f32
    HW = patches.shape[0]

    # Bias fold: ones column, then zero-pad K to match the K-padded weight.
    K_total = w_fused.shape[0]
    k_pad = K_total - (patches.shape[1] + 1)
    patches = jnp.concatenate(
        [patches,
         jnp.ones((HW, 1), patches.dtype),
         jnp.zeros((HW, k_pad), patches.dtype)],
        axis=1,
    ).astype(jnp.bfloat16)                          # (HW, K_total) bf16

    packed = rpn_heads_pallas(patches, w_fused)     # (HW, 128) f32

    loc = packed[:, : 4 * A]                 # (HW, 4A)
    score = packed[:, 4 * A: 6 * A]          # (HW, 2A) raw logits
    fg_logit = packed[:, 6 * A: 7 * A]       # (HW, A)  fg - bg logit (monotone in
                                             #          softmax(score, dim=1)[:, 1])

    # permute(1,2,0).reshape(-1, k) in torch  ==  (HW, k*A).reshape(HW*A, k) here
    rpn_loc = loc.reshape(H * W * A, 4)
    rpn_score = score.reshape(H * W * A, 2)
    fg_score = fg_logit.reshape(H * W * A)

    roi = simple_proposal(anchor, rpn_loc, fg_score, img_size)
    return roi, anchor, rpn_loc, rpn_score


if __name__ == "__main__":
    key = jax.random.PRNGKey(0)
    kx, kp = jax.random.split(key)

    N, C, H, W = 2, IN_CHANNEL, 16, 16
    x = jax.random.normal(kx, (N, C, H, W), jnp.float32)      # NCHW, like torch
    img_size = (float(H * FEATURE_STRIDE), float(W * FEATURE_STRIDE))

    raw = init_rpn_params(kp, IN_CHANNEL, MID_CHANNEL, N_ANCHOR)
    w_fused = fold_rpn_params(*raw)

    roi, anchor, rpn_loc, rpn_score = rpn_forward(x, img_size, w_fused)
    jax.block_until_ready((roi, anchor, rpn_loc, rpn_score))

    assert roi.shape == (128, 4)
    assert anchor.shape == (H * W * N_ANCHOR, 4)
    assert rpn_loc.shape == (H * W * N_ANCHOR, 4)
    assert rpn_score.shape == (H * W * N_ANCHOR, 2)
    assert bool(jnp.all(jnp.isfinite(rpn_loc))) and bool(jnp.all(jnp.isfinite(rpn_score)))
    print("KERNEL_OK")
</pallas_src>

<mosaic_0001>
module attributes {stable_mosaic.version = 11 : i64} {
  func.func @_rpn_fused_kernel(%arg0: i32, %arg1: memref<256x40xbf16, #tpu.memory_space<vmem>>, %arg2: memref<40x128xbf16, #tpu.memory_space<vmem>>, %arg3: memref<256x128xf32, #tpu.memory_space<vmem>>) attributes {dimension_semantics = [#tpu.dimension_semantics<parallel>], iteration_bounds = array<i64: 1>, scalar_prefetch = 0 : i64, scratch_operands = 0 : i64, tpu.core_type = #tpu.core_type<tc>, window_params = [{transform_indices = @transform_0, window_bounds = array<i64: 256, 40>}, {pipeline_mode = #tpu.pipeline_mode<synchronous>, transform_indices = @transform_1, window_bounds = array<i64: 40, 128>}, {transform_indices = @transform_2, window_bounds = array<i64: 256, 128>}]} {
    %c0 = arith.constant 0 : index
    %c0_0 = arith.constant 0 : index
    %0 = vector.load %arg1[%c0, %c0_0] : memref<256x40xbf16, #tpu.memory_space<vmem>>, vector<256x40xbf16>
    %c0_1 = arith.constant 0 : index
    %c0_2 = arith.constant 0 : index
    %1 = vector.load %arg2[%c0_1, %c0_2] : memref<40x128xbf16, #tpu.memory_space<vmem>>, vector<40x128xbf16>
    %cst = arith.constant dense<0.000000e+00> : vector<256x128xf32>
    %2 = tpu.matmul %0, %1, %cst {dimension_numbers = #tpu.dot_dimension_numbers<[1], [0], [0], [1], [0, 0, 1, 1], [], []>} : vector<256x40xbf16>, vector<40x128xbf16>, vector<256x128xf32> -> vector<256x128xf32>
    %c0_3 = arith.constant 0 : index
    %c0_4 = arith.constant 0 : index
    %3 = vector.load %arg3[%c0_3, %c0_4] : memref<256x128xf32, #tpu.memory_space<vmem>>, vector<256x128xf32>
    tpu.vector_store %arg3[%c0_3, %c0_4], %2 {strides = array<i32>} : memref<256x128xf32, #tpu.memory_space<vmem>>, vector<256x128xf32>,
    return
  }
  func.func @transform_0(%arg0: i32) -> (i32, i32) {
    %c0_i32 = arith.constant 0 : i32
    %c0_i32_0 = arith.constant 0 : i32
    return %arg0, %c0_i32 : i32, i32
  }
  func.func @transform_1(%arg0: i32) -> (i32, i32) {
    %c0_i32 = arith.constant 0 : i32
    %c0_i32_0 = arith.constant 0 : i32
    %c0_i32_1 = arith.constant 0 : i32
    return %c0_i32, %c0_i32_0 : i32, i32
  }
  func.func @transform_2(%arg0: i32) -> (i32, i32) {
    %c0_i32 = arith.constant 0 : i32
    %c0_i32_0 = arith.constant 0 : i32
    return %arg0, %c0_i32 : i32, i32
  }
}

</mosaic_0001>

<llo_original>
// kernel: tpu_custom_call.1
$region0: #{tpu_custom_call.1}
  #allocation0 [shape = 'u32[]', space=smem, size = 0x4, offset = 0x4, fixed_abs, tag = 'smem constant byte address 0x4 - core index']
  #allocation1 [shape = 'u32[72,128]{1,0:T(1,128)}', space=vmem, size = 0x9000, scoped, tag = 'internal scratch']
  %s0 = inlined_call_operand.vmem [shape: bf16[256,40], index: 0, kind: input, shape index: {}]
  %s1 = inlined_call_operand.vmem [shape: bf16[40,128], index: 1, kind: input, shape index: {}]
  %s2 = inlined_call_operand.hbm [shape: f32[256,128], index: 2, kind: output, shape index: {}]
  %s3 = sld [smem:[#allocation0]]
  $region18: #{tpu_custom_call.1} parent=0
    _
  %s5 = ssub.s32 1, %s3
  %s6 = scalar_select 0, %s5, %s3
  $region1: #{tpu_custom_call.1} parent=0
    #allocation2 [shape = 'u8[131072]{0}', space=vmem, size = 0x20000, scoped, tag = 'output window, operand 0, single buffered']
    #allocation3 [shape = 's32[1]{0}', space=sflag, size = 0x4, scoped, tag = 'scoped memory for tpu_custom_call.1']
    %7 = vsyncpa [#allocation3], 0
    // Predicated region
    $region2: #{tpu_custom_call.1} parent=1 // pred_check
      _
    $region3: #{tpu_custom_call.1} parent=1 // pred_check_branch
      %9 = sbr.rel (0) target = $region5
    $region4: #{tpu_custom_call.1} parent=1 // pred_region
      _
    $region5: #{tpu_custom_call.1} parent=1 // pred_fallthru
      _
    // Predicated region
    $region6: #{tpu_custom_call.1} parent=1 // pred_check
      _
    $region7: #{tpu_custom_call.1} parent=1 // pred_check_branch
      %11 = sbr.rel (0) target = $region9
    $region8: #{tpu_custom_call.1} parent=1 // pred_region
      _
    $region9: #{tpu_custom_call.1} parent=1 // pred_fallthru
      _
    %v13 = vld [vmem:[%s0] sm:$0xf]
    %v14 = vld [vmem:[%s0 + $0x4] sm:$0xf]
    %v15 = vld [vmem:[%s0 + $0x8] sm:$0xf]
    %v16 = vld [vmem:[%s0 + $0xc] sm:$0xf]
    %v17 = vld [vmem:[%s0 + $0x10] sm:$0xf]
    %v18 = vld [vmem:[%s0 + $0x14] sm:$0xf]
    %v19 = vld [vmem:[%s0 + $0x18] sm:$0xf]
    %v20 = vld [vmem:[%s0 + $0x1c] sm:$0xf]
    %v21 = vld [vmem:[%s0 + $0x20] sm:$0xf]
    %v22 = vld [vmem:[%s0 + $0x24] sm:$0xf]
    %v23 = vld [vmem:[%s0 + $0x28] sm:$0xf]
    %v24 = vld [vmem:[%s0 + $0x2c] sm:$0xf]
    %v25 = vld [vmem:[%s0 + $0x30] sm:$0xf]
    %v26 = vld [vmem:[%s0 + $0x34] sm:$0xf]
    %v27 = vld [vmem:[%s0 + $0x38] sm:$0xf]
    %v28 = vld [vmem:[%s0 + $0x3c] sm:$0xf]
    %v29 = vld [vmem:[%s0 + $0x40] sm:$0xf]
    %v30 = vld [vmem:[%s0 + $0x44] sm:$0xf]
    %v31 = vld [vmem:[%s0 + $0x48] sm:$0xf]
    %v32 = vld [vmem:[%s0 + $0x4c] sm:$0xf]
    %v33 = vld [vmem:[%s0 + $0x50] sm:$0xf]
    %v34 = vld [vmem:[%s0 + $0x54] sm:$0xf]
    %v35 = vld [vmem:[%s0 + $0x58] sm:$0xf]
    %v36 = vld [vmem:[%s0 + $0x5c] sm:$0xf]
    %v37 = vld [vmem:[%s0 + $0x60] sm:$0xf]
    %v38 = vld [vmem:[%s0 + $0x64] sm:$0xf]
    %v39 = vld [vmem:[%s0 + $0x68] sm:$0xf]
    %v40 = vld [vmem:[%s0 + $0x6c] sm:$0xf]
    %v41 = vld [vmem:[%s0 + $0x70] sm:$0xf]
    %v42 = vld [vmem:[%s0 + $0x74] sm:$0xf]
    %v43 = vld [vmem:[%s0 + $0x78] sm:$0xf]
    %v44 = vld [vmem:[%s0 + $0x7c] sm:$0xf]
    %v45 = vld [vmem:[%s1] sm:$0xf]
    %v46 = vld [vmem:[%s1 + $0x4] sm:$0xf]
    %v47 = vld [vmem:[%s1 + $0x8] sm:$0xf]
    %v48 = vld [vmem:[%s1 + $0xc] sm:$0xf]
    %v49 = vld [vmem:[%s1 + $0x10] sm:$0xf]
    %v82 = vunpack.c.l.b16 %v13
    %v83 = vunpack.c.l.b16 %v14
    %v84 = vunpack.c.l.b16 %v15
    %v85 = vunpack.c.l.b16 %v16
    %v86 = vunpack.c.l.b16 %v17
    %v87 = vunpack.c.l.b16 %v18
    %v88 = vunpack.c.l.b16 %v19
    %v89 = vunpack.c.l.b16 %v20
    %v90 = vunpack.c.l.b16 %v21
    %v91 = vunpack.c.l.b16 %v22
    %v92 = vunpack.c.l.b16 %v23
    %v93 = vunpack.c.l.b16 %v24
    %v94 = vunpack.c.l.b16 %v25
    %v95 = vunpack.c.l.b16 %v26
    %v96 = vunpack.c.l.b16 %v27
    %v97 = vunpack.c.l.b16 %v28
    %v98 = vunpack.c.l.b16 %v29
    %v99 = vunpack.c.l.b16 %v30
    %v100 = vunpack.c.l.b16 %v31
    %v101 = vunpack.c.l.b16 %v32
    %v102 = vunpack.c.l.b16 %v33
    %v103 = vunpack.c.l.b16 %v34
    %v104 = vunpack.c.l.b16 %v35
    %v105 = vunpack.c.l.b16 %v36
    %v106 = vunpack.c.l.b16 %v37
    %v107 = vunpack.c.l.b16 %v38
    %v108 = vunpack.c.l.b16 %v39
    %v109 = vunpack.c.l.b16 %v40
    %v110 = vunpack.c.l.b16 %v41
    %v111 = vunpack.c.l.b16 %v42
    %v112 = vunpack.c.l.b16 %v43
    %v113 = vunpack.c.l.b16 %v44
    %v114 = vpack.c.b16 %v83, %v82
    %v115 = vpack.c.b16 %v85, %v84
    %v116 = vpack.c.b16 %v87, %v86
    %v117 = vpack.c.b16 %v89, %v88
    %v118 = vpack.c.b16 %v91, %v90
    %v119 = vpack.c.b16 %v93, %v92
    %v120 = vpack.c.b16 %v95, %v94
    %v121 = vpack.c.b16 %v97, %v96
    %v122 = vpack.c.b16 %v99, %v98
    %v123 = vpack.c.b16 %v101, %v100
    %v124 = vpack.c.b16 %v103, %v102
    %v125 = vpack.c.b16 %v105, %v104
    %v126 = vpack.c.b16 %v107, %v106
    %v127 = vpack.c.b16 %v109, %v108
    %v128 = vpack.c.b16 %v111, %v110
    %v129 = vpack.c.b16 %v113, %v112
    %v135 = vunpack.c.l.b16 %v45
    %v136 = vunpack.c.l.b16 %v46
    %v137 = vunpack.c.l.b16 %v47
    %v138 = vunpack.c.l.b16 %v48
    %v139 = vunpack.c.l.b16 %v49
    %v140 = vpack.c.b16 %v136, %v135
    %v141 = vpack.c.b16 %v138, %v137
    %v142 = vpack.c.b16 %v139, %v139
    %vm145 = vcmask 326656
    %v147 = vsel %vm145, %v114, 0
    %v150 = vsel %vm145, %v115, 0
    %v153 = vsel %vm145, %v116, 0
    %v156 = vsel %vm145, %v117, 0
    %v159 = vsel %vm145, %v118, 0
    %v162 = vsel %vm145, %v119, 0
    %v165 = vsel %vm145, %v120, 0
    %v168 = vsel %vm145, %v121, 0
    %v171 = vsel %vm145, %v122, 0
    %v174 = vsel %vm145, %v123, 0
    %v177 = vsel %vm145, %v124, 0
    %v180 = vsel %vm145, %v125, 0
    %v183 = vsel %vm145, %v126, 0
    %v186 = vsel %vm145, %v127, 0
    %v189 = vsel %vm145, %v128, 0
    %v192 = vsel %vm145, %v129, 0
    %vm194 = vcmask 1043456
    %v196 = vsel %vm194, %v142, 0
    %198 = vmatpush.bf16.msra.mxu0 0
    %199 = vmatpush.bf16.msra.mxu0 0
    %200 = vmatpush.bf16.msra.mxu0 0
    %201 = vmatpush.bf16.msra.mxu0 0
    %202 = vmatpush.bf16.msra.mxu0 0
    %203 = vmatpush.bf16.msra.mxu0 %v196
    %204 = vmatpush.bf16.msra.mxu0 %v141
    %205 = vmatpush.bf16.msra.mxu0 %v140
    %206 = vmatmul.bf16.gmra.mxu0 %v147
    %v207 = vpop.f32.mrf.mxu0
    %v208 = vadd.f32 0.0, %v207
    %v209 = vpop.f32.mrf.mxu0
    %v210 = vadd.f32 0.0, %v209
    %211 = vmatmul.bf16.gmra.mxu0 %v150
    %v212 = vpop.f32.mrf.mxu0
    %v213 = vadd.f32 0.0, %v212
    %v214 = vpop.f32.mrf.mxu0
    %v215 = vadd.f32 0.0, %v214
    %216 = vmatmul.bf16.gmra.mxu0 %v153
    %v217 = vpop.f32.mrf.mxu0
    %v218 = vadd.f32 0.0, %v217
    %v219 = vpop.f32.mrf.mxu0
    %v220 = vadd.f32 0.0, %v219
    %221 = vmatmul.bf16.gmra.mxu0 %v156
    %v222 = vpop.f32.mrf.mxu0
    %v223 = vadd.f32 0.0, %v222
    %v224 = vpop.f32.mrf.mxu0
    %v225 = vadd.f32 0.0, %v224
    %226 = vmatmul.bf16.gmra.mxu0 %v159
    %v227 = vpop.f32.mrf.mxu0
    %v228 = vadd.f32 0.0, %v227
    %v229 = vpop.f32.mrf.mxu0
    %v230 = vadd.f32 0.0, %v229
    %231 = vmatmul.bf16.gmra.mxu0 %v162
    %v232 = vpop.f32.mrf.mxu0
    %v233 = vadd.f32 0.0, %v232
    %v234 = vpop.f32.mrf.mxu0
    %v235 = vadd.f32 0.0, %v234
    %236 = vmatmul.bf16.gmra.mxu0 %v165
    %v237 = vpop.f32.mrf.mxu0
    %v238 = vadd.f32 0.0, %v237
    %v239 = vpop.f32.mrf.mxu0
    %v240 = vadd.f32 0.0, %v239
    %241 = vmatmul.bf16.gmra.mxu0 %v168
    %v242 = vpop.f32.mrf.mxu0
    %v243 = vadd.f32 0.0, %v242
    %v244 = vpop.f32.mrf.mxu0
    %v245 = vadd.f32 0.0, %v244
    %246 = vmatmul.bf16.gmra.mxu0 %v171
    %v247 = vpop.f32.mrf.mxu0
    %v248 = vadd.f32 0.0, %v247
    %v249 = vpop.f32.mrf.mxu0
    %v250 = vadd.f32 0.0, %v249
    %251 = vmatmul.bf16.gmra.mxu0 %v174
    %v252 = vpop.f32.mrf.mxu0
    %v253 = vadd.f32 0.0, %v252
    %v254 = vpop.f32.mrf.mxu0
    %v255 = vadd.f32 0.0, %v254
    %256 = vmatmul.bf16.gmra.mxu0 %v177
    %v257 = vpop.f32.mrf.mxu0
    %v258 = vadd.f32 0.0, %v257
    %v259 = vpop.f32.mrf.mxu0
    %v260 = vadd.f32 0.0, %v259
    %261 = vmatmul.bf16.gmra.mxu0 %v180
    %v262 = vpop.f32.mrf.mxu0
    %v263 = vadd.f32 0.0, %v262
    %v264 = vpop.f32.mrf.mxu0
    %v265 = vadd.f32 0.0, %v264
    %266 = vmatmul.bf16.gmra.mxu0 %v183
    %v267 = vpop.f32.mrf.mxu0
    %v268 = vadd.f32 0.0, %v267
    %v269 = vpop.f32.mrf.mxu0
    %v270 = vadd.f32 0.0, %v269
    %271 = vmatmul.bf16.gmra.mxu0 %v186
    %v272 = vpop.f32.mrf.mxu0
    %v273 = vadd.f32 0.0, %v272
    %v274 = vpop.f32.mrf.mxu0
    %v275 = vadd.f32 0.0, %v274
    %276 = vmatmul.bf16.gmra.mxu0 %v189
    %v277 = vpop.f32.mrf.mxu0
    %v278 = vadd.f32 0.0, %v277
    %v279 = vpop.f32.mrf.mxu0
    %v280 = vadd.f32 0.0, %v279
    %281 = vmatmul.bf16.gmra.mxu0 %v192
    %v282 = vpop.f32.mrf.mxu0
    %v283 = vadd.f32 0.0, %v282
    %v284 = vpop.f32.mrf.mxu0
    %v285 = vadd.f32 0.0, %v284
    %286 = vdwg.mxu0
    %287 = vst [vmem:[#allocation2] sm:$0xff] %v208
    %288 = vst [vmem:[#allocation2 + $0x8] sm:$0xff] %v210
    %289 = vst [vmem:[#allocation2 + $0x10] sm:$0xff] %v213
    %290 = vst [vmem:[#allocation2 + $0x18] sm:$0xff] %v215
    %291 = vst [vmem:[#allocation2 + $0x20] sm:$0xff] %v218
    %292 = vst [vmem:[#allocation2 + $0x28] sm:$0xff] %v220
    %293 = vst [vmem:[#allocation2 + $0x30] sm:$0xff] %v223
    %294 = vst [vmem:[#allocation2 + $0x38] sm:$0xff] %v225
    %295 = vst [vmem:[#allocation2 + $0x40] sm:$0xff] %v228
    %296 = vst [vmem:[#allocation2 + $0x48] sm:$0xff] %v230
    %297 = vst [vmem:[#allocation2 + $0x50] sm:$0xff] %v233
    %298 = vst [vmem:[#allocation2 + $0x58] sm:$0xff] %v235
    %299 = vst [vmem:[#allocation2 + $0x60] sm:$0xff] %v238
    %300 = vst [vmem:[#allocation2 + $0x68] sm:$0xff] %v240
    %301 = vst [vmem:[#allocation2 + $0x70] sm:$0xff] %v243
    %302 = vst [vmem:[#allocation2 + $0x78] sm:$0xff] %v245
    %303 = vst [vmem:[#allocation2 + $0x80] sm:$0xff] %v248
    %304 = vst [vmem:[#allocation2 + $0x88] sm:$0xff] %v250
    %305 = vst [vmem:[#allocation2 + $0x90] sm:$0xff] %v253
    %306 = vst [vmem:[#allocation2 + $0x98] sm:$0xff] %v255
    %307 = vst [vmem:[#allocation2 + $0xa0] sm:$0xff] %v258
    %308 = vst [vmem:[#allocation2 + $0xa8] sm:$0xff] %v260
    %309 = vst [vmem:[#allocation2 + $0xb0] sm:$0xff] %v263
    %310 = vst [vmem:[#allocation2 + $0xb8] sm:$0xff] %v265
    %311 = vst [vmem:[#allocation2 + $0xc0] sm:$0xff] %v268
    %312 = vst [vmem:[#allocation2 + $0xc8] sm:$0xff] %v270
    %313 = vst [vmem:[#allocation2 + $0xd0] sm:$0xff] %v273
    %314 = vst [vmem:[#allocation2 + $0xd8] sm:$0xff] %v275
    %315 = vst [vmem:[#allocation2 + $0xe0] sm:$0xff] %v278
    %316 = vst [vmem:[#allocation2 + $0xe8] sm:$0xff] %v280
    %317 = vst [vmem:[#allocation2 + $0xf0] sm:$0xff] %v283
    %318 = vst [vmem:[#allocation2 + $0xf8] sm:$0xff] %v285
    // Predicated region
    $region10: #{tpu_custom_call.1} parent=1 // pred_check
      _
    $region11: #{tpu_custom_call.1} parent=1 // pred_check_branch
      %320 = sbr.rel (0) target = $region13
    $region12: #{tpu_custom_call.1} parent=1 // pred_region
      %322 = vsyncadd [#allocation3], 0
      %s323 = sshll.u32 [#allocation2], 4
      %s324 = int_to_ptr.vmem [resolvable:$true] %s323
      %s325 = sshll.u32 %s2, 4
      %s326 = int_to_ptr.hbm [resolvable:$true] %s325
      %331 = dma.vmem_to_hbm [thread:$0]  %s324, 4096, %s326, [#allocation3], 128, 128, 8
    $region13: #{tpu_custom_call.1} parent=1 // pred_fallthru
      _
    // Predicated region
    $region14: #{tpu_custom_call.1} parent=1 // pred_check
      _
    $region15: #{tpu_custom_call.1} parent=1 // pred_check_branch
      %333 = sbr.rel (0) target = $region17
    $region16: #{tpu_custom_call.1} parent=1 // pred_region
      %335 = dma.done [#allocation3], 4096
    $region17: #{tpu_custom_call.1} parent=1 // pred_fallthru
      _
    %336 = vsyncpa [#allocation3], 1

</llo_original>
